<compile_context>
chip_gen: v6e
topology: v6e:2x2x1
jax: 0.10.0
libtpu: 0.0.40
codegen_flags: <defaults>
</compile_context>

<pallas_src>
import functools

import jax
import jax.numpy as jnp
from jax.experimental import pallas as pl
from jax.experimental.pallas import tpu as pltpu

EPS = 1e-5
_LANE = 128     # lane width: last-dim alignment
_SUB = 8        # f32 sublane alignment


def _round_up(v, m):
    return (v + m - 1) // m * m


def _pad2(a, r, c):
    return jnp.pad(a, ((0, r - a.shape[0]), (0, c - a.shape[1])))


def _pad_row(a, c):
    a = jnp.asarray(a, jnp.float32).reshape(1, -1)
    return jnp.pad(a, ((0, 0), (0, c - a.shape[1])))


def _vmem_limit_bytes():
    """Generation-aware VMEM budget (leave headroom for compiler scratch)."""
    cap = 64 * 1024 * 1024          # conservative fallback (v7x-sized)
    try:
        info = pltpu.get_tpu_info()
        c = getattr(info, "vmem_capacity_bytes", None)
        if c:
            cap = int(c)
    except Exception:
        pass
    return max(32 * 1024 * 1024, min(cap * 3 // 4, cap - 16 * 1024 * 1024))


# ---------------------------------------------------------------------------
# Fused single-block kernel (small problems: everything resident in VMEM).
# ---------------------------------------------------------------------------
def _fused_kernel(x_ref, g1_ref, be1_ref, w1_ref, b1_ref,
                  g2_ref, be2_ref, w2_ref, b2_ref, ws_ref, bs_ref, o_ref):
    x = x_ref[...]                                   # (n, cin_p) f32
    inv_n = jnp.float32(1.0 / x.shape[0])

    # Shortcut matmul first: MXU overlaps the bn1 VPU/XLU work.
    sc = jnp.dot(x.astype(ws_ref.dtype), ws_ref[...],
                 preferred_element_type=jnp.float32) + bs_ref[...]

    # bn1: exact two-pass mean/var (biased), affine applied on centered values.
    m1 = jnp.sum(x, axis=0, keepdims=True) * inv_n
    xc = x - m1
    v1 = jnp.sum(xc * xc, axis=0, keepdims=True) * inv_n
    scale1 = g1_ref[...] * jax.lax.rsqrt(v1 + EPS)
    a = jnp.maximum(xc * scale1 + be1_ref[...], 0.0).astype(w1_ref.dtype)

    # linear1
    h = jnp.dot(a, w1_ref[...], preferred_element_type=jnp.float32) + b1_ref[...]

    # bn2 (two-pass)
    m2 = jnp.sum(h, axis=0, keepdims=True) * inv_n
    hc = h - m2
    v2 = jnp.sum(hc * hc, axis=0, keepdims=True) * inv_n
    scale2 = g2_ref[...] * jax.lax.rsqrt(v2 + EPS)
    a2 = jnp.maximum(hc * scale2 + be2_ref[...], 0.0).astype(w2_ref.dtype)

    # linear2 + residual + relu
    y = jnp.dot(a2, w2_ref[...], preferred_element_type=jnp.float32) + b2_ref[...]
    o_ref[...] = jnp.maximum(y + sc, 0.0).astype(o_ref.dtype)


# ---------------------------------------------------------------------------
# Tiled 3-pass path (large batches): all passes megacore-parallel.
# ---------------------------------------------------------------------------
def _stats_x_kernel(n_true, tm, x_ref, x0_ref, s_ref, q_ref):
    """Per-tile partial sum / sum-sq of (x - x0), ragged rows masked."""
    i = pl.program_id(0)
    row = i * tm + jax.lax.broadcasted_iota(jnp.int32, (tm, 1), 0)
    xs = jnp.where(row < n_true, x_ref[...] - x0_ref[...], 0.0)
    s_ref[...] = jnp.sum(xs, axis=0, keepdims=True)[None]
    q_ref[...] = jnp.sum(xs * xs, axis=0, keepdims=True)[None]


def _bn1_lin1_kernel(n_true, tm, x_ref, sc1_ref, sh1_ref, w1_ref, b1_ref,
                     h_ref, s_ref, q_ref):
    """bn1-normalize -> relu -> linear1; emit h and partial bn2 stats."""
    i = pl.program_id(0)
    x = x_ref[...]
    a = jnp.maximum(x * sc1_ref[...] + sh1_ref[...], 0.0).astype(w1_ref.dtype)
    h = jnp.dot(a, w1_ref[...], preferred_element_type=jnp.float32) + b1_ref[...]
    h_ref[...] = h.astype(h_ref.dtype)

    row = i * tm + jax.lax.broadcasted_iota(jnp.int32, (tm, 1), 0)
    hs = jnp.where(row < n_true, h - b1_ref[...], 0.0)   # shift by b1 (stability)
    s_ref[...] = jnp.sum(hs, axis=0, keepdims=True)[None]
    q_ref[...] = jnp.sum(hs * hs, axis=0, keepdims=True)[None]


def _bn2_lin2_kernel(h_ref, x_ref, sc2_ref, sh2_ref, w2_ref, b2_ref,
                     ws_ref, bs_ref, o_ref):
    """Shortcut matmul (on the fly) + bn2 -> relu -> linear2 -> add -> relu."""
    sc = jnp.dot(x_ref[...].astype(ws_ref.dtype), ws_ref[...],
                 preferred_element_type=jnp.float32) + bs_ref[...]
    h = h_ref[...].astype(jnp.float32)
    a = jnp.maximum(h * sc2_ref[...] + sh2_ref[...], 0.0).astype(w2_ref.dtype)
    y = jnp.dot(a, w2_ref[...], preferred_element_type=jnp.float32) + b2_ref[...]
    o_ref[...] = jnp.maximum(y + sc, 0.0).astype(o_ref.dtype)


# ---------------------------------------------------------------------------
# Wrappers
# ---------------------------------------------------------------------------
def _forward_fused(x_p, pp, n, cout, cin_p, cout_p, vmem_limit):
    def full(a):
        nd = a.ndim
        return pl.BlockSpec(a.shape, lambda: (0,) * nd)

    w_isz = jnp.dtype(pp[2].dtype).itemsize
    flops = 2 * n * cout_p * (2 * cin_p + cout_p)
    bytes_accessed = (4 * n * (cin_p + cout_p)
                      + w_isz * (2 * cin_p * cout_p + cout_p * cout_p)
                      + 4 * (2 * cin_p + 6 * cout_p))

    out = pl.pallas_call(
        _fused_kernel,
        out_shape=jax.ShapeDtypeStruct((n, cout_p), jnp.float32),
        in_specs=[full(x_p)] + [full(a) for a in pp],
        out_specs=pl.BlockSpec((n, cout_p), lambda: (0, 0)),
        compiler_params=pltpu.CompilerParams(vmem_limit_bytes=vmem_limit),
        cost_estimate=pl.CostEstimate(flops=flops, transcendentals=0,
                                      bytes_accessed=bytes_accessed),
    )(x_p, *pp)
    return out if cout_p == cout else out[:, :cout]


def _forward_tiled(x_p, pp, n, cout, cin_p, cout_p, tm, h_dtype, vmem_limit):
    (g1_p, be1_p, w1_p, b1_p, g2_p, be2_p, w2_p, b2_p, ws_p, bs_p) = pp
    n_tiles = pl.cdiv(n, tm)
    x0 = x_p[0:1, :]                                   # bn1 shift row

    cp = pltpu.CompilerParams(dimension_semantics=("parallel",),
                              vmem_limit_bytes=vmem_limit)

    def rows(c):
        return pl.BlockSpec((tm, c), lambda i: (i, 0))

    def whole(a):
        nd = a.ndim
        return pl.BlockSpec(a.shape, lambda i: (0,) * nd)

    def part_shape(c):
        return jax.ShapeDtypeStruct((n_tiles, 1, c), jnp.float32)

    def part_spec(c):
        return pl.BlockSpec((1, 1, c), lambda i: (i, 0, 0))

    w_isz = jnp.dtype(w1_p.dtype).itemsize
    h_isz = jnp.dtype(h_dtype).itemsize
    inv_n = jnp.float32(1.0 / n)

    # ---- pass 1: streaming bn1 statistics of x (per-tile partials) ----
    s1p, q1p = pl.pallas_call(
        functools.partial(_stats_x_kernel, n, tm),
        grid=(n_tiles,),
        out_shape=(part_shape(cin_p), part_shape(cin_p)),
        in_specs=[rows(cin_p), whole(x0)],
        out_specs=(part_spec(cin_p), part_spec(cin_p)),
        compiler_params=cp,
        cost_estimate=pl.CostEstimate(flops=3 * n * cin_p, transcendentals=0,
                                      bytes_accessed=4 * n * cin_p),
    )(x_p, x0)

    s1 = jnp.sum(s1p, axis=0) * inv_n        # E[x - x0]
    q1 = jnp.sum(q1p, axis=0) * inv_n        # E[(x - x0)^2]
    v1 = q1 - s1 * s1
    m1 = s1 + x0
    scale1 = g1_p * jax.lax.rsqrt(v1 + EPS)
    shift1 = be1_p - m1 * scale1

    # ---- pass 2: bn1 -> relu -> linear1, emit h (narrow dtype) + bn2 stats ----
    h_full, s2p, q2p = pl.pallas_call(
        functools.partial(_bn1_lin1_kernel, n, tm),
        grid=(n_tiles,),
        out_shape=(jax.ShapeDtypeStruct((n, cout_p), h_dtype),
                   part_shape(cout_p), part_shape(cout_p)),
        in_specs=[rows(cin_p), whole(scale1), whole(shift1),
                  whole(w1_p), whole(b1_p)],
        out_specs=(rows(cout_p), part_spec(cout_p), part_spec(cout_p)),
        compiler_params=cp,
        cost_estimate=pl.CostEstimate(
            flops=2 * n * cin_p * cout_p, transcendentals=0,
            bytes_accessed=(4 * n * cin_p + h_isz * n * cout_p
                            + w_isz * cin_p * cout_p)),
    )(x_p, scale1, shift1, w1_p, b1_p)

    s2 = jnp.sum(s2p, axis=0) * inv_n
    q2 = jnp.sum(q2p, axis=0) * inv_n
    v2 = q2 - s2 * s2
    m2 = s2 + b1_p
    scale2 = g2_p * jax.lax.rsqrt(v2 + EPS)
    shift2 = be2_p - m2 * scale2

    # ---- pass 3: shortcut matmul + bn2 -> relu -> linear2 -> add -> relu ----
    out = pl.pallas_call(
        _bn2_lin2_kernel,
        grid=(n_tiles,),
        out_shape=jax.ShapeDtypeStruct((n, cout_p), jnp.float32),
        in_specs=[rows(cout_p), rows(cin_p), whole(scale2), whole(shift2),
                  whole(w2_p), whole(b2_p), whole(ws_p), whole(bs_p)],
        out_specs=rows(cout_p),
        compiler_params=cp,
        cost_estimate=pl.CostEstimate(
            flops=2 * n * cout_p * (cin_p + cout_p), transcendentals=0,
            bytes_accessed=(h_isz * n * cout_p + 4 * n * (cin_p + cout_p)
                            + w_isz * (cin_p * cout_p + cout_p * cout_p))),
    )(h_full, x_p, scale2, shift2, w2_p, b2_p, ws_p, bs_p)

    return out if cout_p == cout else out[:, :cout]


def _auto_block_rows(cin_p, cout_p, w_isz, h_isz, row_align, vmem_limit):
    # TODO(synk): K/N-tile the weights (VMEM accumulator) for very large C.
    budget = int(vmem_limit * 0.6)
    w_worst = w_isz * (cin_p * cout_p + cout_p * cout_p)     # pass 3: ws + w2
    per_row = 2 * (4 * cin_p + 4 * cout_p + h_isz * cout_p) + 8 * cout_p
    cap_rows = 1024 if vmem_limit <= 48 * 1024 * 1024 else 2048
    tm = (budget - w_worst) // max(per_row, 1)
    return max(row_align, min(cap_rows, tm // row_align * row_align))


@functools.partial(jax.jit, static_argnames=("block_rows", "matmul_dtype"))
def residual_forward(x, params, *, block_rows=None, matmul_dtype=jnp.bfloat16):
    """Residual block forward.  block_rows: None=auto, 0=force fused, >0=tiled."""
    g1, be1, w1, b1, g2, be2, w2, b2, ws, bs = params
    n, cin = x.shape
    cout = w1.shape[1]
    cin_p = _round_up(cin, _LANE)
    cout_p = _round_up(cout, _LANE)

    # Lane-dense columns only (rows handled via in-kernel masking -> no big
    # wrapper-side pad copy of x when cin is already aligned).
    x_p = jnp.asarray(x, jnp.float32)
    if cin_p != cin:
        x_p = jnp.pad(x_p, ((0, 0), (0, cin_p - cin)))

    # Zero-pad params; weights pre-cast to the MXU operand dtype.
    pp = (
        _pad_row(g1, cin_p), _pad_row(be1, cin_p),
        _pad2(jnp.asarray(w1, jnp.float32), cin_p, cout_p).astype(matmul_dtype),
        _pad_row(b1, cout_p),
        _pad_row(g2, cout_p), _pad_row(be2, cout_p),
        _pad2(jnp.asarray(w2, jnp.float32), cout_p, cout_p).astype(matmul_dtype),
        _pad_row(b2, cout_p),
        _pad2(jnp.asarray(ws, jnp.float32), cin_p, cout_p).astype(matmul_dtype),
        _pad_row(bs, cout_p),
    )

    vmem_limit = _vmem_limit_bytes()
    w_isz = jnp.dtype(matmul_dtype).itemsize
    h_dtype = (jnp.bfloat16
               if jnp.dtype(matmul_dtype) == jnp.dtype(jnp.bfloat16)
               else jnp.float32)
    row_align = 16 if h_dtype == jnp.bfloat16 else _SUB

    if block_rows is None:
        # Fused-path envelope: x + ~4 live (n, cout_p) f32 temporaries + weights.
        act_bytes = 4 * n * (2 * cin_p + 4 * cout_p)
        w_bytes = w_isz * (2 * cin_p * cout_p + cout_p * cout_p)
        if act_bytes + w_bytes <= vmem_limit // 2:
            block_rows = 0
        else:
            block_rows = _auto_block_rows(cin_p, cout_p, w_isz,
                                          jnp.dtype(h_dtype).itemsize,
                                          row_align, vmem_limit)

    if block_rows == 0:
        return _forward_fused(x_p, pp, n, cout, cin_p, cout_p, vmem_limit)

    tm = max(row_align, _round_up(int(block_rows), row_align))
    tm = min(tm, _round_up(n, row_align))
    return _forward_tiled(x_p, pp, n, cout, cin_p, cout_p, tm, h_dtype,
                          vmem_limit)


# ---------------------------------------------------------------------------
# Pure-JAX reference (matches PyTorch training-mode forward).
# ---------------------------------------------------------------------------
def residual_ref(x, params, matmul_dtype=jnp.float32):
    g1, be1, w1, b1, g2, be2, w2, b2, ws, bs = params
    x = x.astype(jnp.float32)

    def bn(h, g, be):
        m = jnp.mean(h, axis=0, keepdims=True)
        v = jnp.mean((h - m) ** 2, axis=0, keepdims=True)
        return (h - m) / jnp.sqrt(v + EPS) * g.reshape(1, -1) + be.reshape(1, -1)

    def mm(a, w):
        return jnp.dot(a.astype(matmul_dtype), w.astype(matmul_dtype),
                       preferred_element_type=jnp.float32)

    h = jax.nn.relu(bn(x, g1, be1))
    h = mm(h, w1) + b1.reshape(1, -1)
    h = jax.nn.relu(bn(h, g2, be2))
    h = mm(h, w2) + b2.reshape(1, -1)
    sc = mm(x, ws) + bs.reshape(1, -1)
    return jax.nn.relu(h + sc)


def make_params(key, cin, cout):
    ks = jax.random.split(key, 10)
    lim1 = 1.0 / (cin ** 0.5)
    lim2 = 1.0 / (cout ** 0.5)
    u = jax.random.uniform
    return tuple(p.astype(jnp.float32) for p in (
        u(ks[0], (1, cin), minval=0.5, maxval=1.5),        # bn1 gamma
        u(ks[1], (1, cin), minval=-0.5, maxval=0.5),       # bn1 beta
        u(ks[2], (cin, cout), minval=-lim1, maxval=lim1),  # linear1 W (in,out)
        u(ks[3], (1, cout), minval=-lim1, maxval=lim1),    # linear1 b
        u(ks[4], (1, cout), minval=0.5, maxval=1.5),       # bn2 gamma
        u(ks[5], (1, cout), minval=-0.5, maxval=0.5),      # bn2 beta
        u(ks[6], (cout, cout), minval=-lim2, maxval=lim2), # linear2 W
        u(ks[7], (1, cout), minval=-lim2, maxval=lim2),    # linear2 b
        u(ks[8], (cin, cout), minval=-lim1, maxval=lim1),  # shortcut W
        u(ks[9], (1, cout), minval=-lim1, maxval=lim1),    # shortcut b
    ))


if __name__ == "__main__":
    key = jax.random.PRNGKey(0)

    # --- test 1: small shapes -> fused kernel, default bf16 MXU operands ---
    k_x, k_p, key = jax.random.split(key, 3)
    batch, cin, cout = 8, 32, 32
    x = jax.random.normal(k_x, (batch, cin), dtype=jnp.float32)
    params = make_params(k_p, cin, cout)
    out = jax.block_until_ready(residual_forward(x, params))
    ref_bf16 = residual_ref(x, params, matmul_dtype=jnp.bfloat16)
    assert out.shape == (batch, cout)
    assert jnp.allclose(out, ref_bf16, atol=3e-2, rtol=3e-2), "fused path mismatch"

    # --- test 2: tiled 3-pass path, f32 operands, ragged batch/features ---
    k_x, k_p, key = jax.random.split(key, 3)
    batch, cin, cout = 1000, 192, 160
    x2 = jax.random.normal(k_x, (batch, cin), dtype=jnp.float32)
    params2 = make_params(k_p, cin, cout)
    out2 = jax.block_until_ready(
        residual_forward(x2, params2, block_rows=256, matmul_dtype=jnp.float32))
    ref2 = residual_ref(x2, params2)
    assert out2.shape == (batch, cout)
    assert jnp.allclose(out2, ref2, atol=1e-3, rtol=1e-3), "tiled f32 mismatch"

    # --- test 3: tiled path, bf16 MXU operands + bf16 inter-pass h ---
    out3 = jax.block_until_ready(residual_forward(x2, params2, block_rows=256))
    ref3 = residual_ref(x2, params2, matmul_dtype=jnp.bfloat16)
    assert jnp.allclose(out3, ref3, atol=5e-2, rtol=5e-2), "tiled bf16 mismatch"

    # --- test 4: auto path selection at the larger shape (default bf16) ---
    out4 = jax.block_until_ready(residual_forward(x2, params2))
    assert jnp.allclose(out4, ref3, atol=5e-2, rtol=5e-2), "auto path mismatch"

    print("KERNEL_OK")
</pallas_src>

<mosaic_0001>
module attributes {stable_mosaic.version = 11 : i64} {
  func.func @_fused_kernel(%arg0: memref<8x128xf32, #tpu.memory_space<vmem>>, %arg1: memref<1x128xf32, #tpu.memory_space<vmem>>, %arg2: memref<1x128xf32, #tpu.memory_space<vmem>>, %arg3: memref<128x128xbf16, #tpu.memory_space<vmem>>, %arg4: memref<1x128xf32, #tpu.memory_space<vmem>>, %arg5: memref<1x128xf32, #tpu.memory_space<vmem>>, %arg6: memref<1x128xf32, #tpu.memory_space<vmem>>, %arg7: memref<128x128xbf16, #tpu.memory_space<vmem>>, %arg8: memref<1x128xf32, #tpu.memory_space<vmem>>, %arg9: memref<128x128xbf16, #tpu.memory_space<vmem>>, %arg10: memref<1x128xf32, #tpu.memory_space<vmem>>, %arg11: memref<8x128xf32, #tpu.memory_space<vmem>>) attributes {dimension_semantics = [], scalar_prefetch = 0 : i64, scratch_operands = 0 : i64, tpu.core_type = #tpu.core_type<tc>} {
    %c0 = arith.constant 0 : index
    %c0_0 = arith.constant 0 : index
    %0 = vector.load %arg0[%c0, %c0_0] : memref<8x128xf32, #tpu.memory_space<vmem>>, vector<8x128xf32>
    %1 = arith.truncf %0 : vector<8x128xf32> to vector<8x128xbf16>
    %c0_1 = arith.constant 0 : index
    %c0_2 = arith.constant 0 : index
    %2 = vector.load %arg9[%c0_1, %c0_2] : memref<128x128xbf16, #tpu.memory_space<vmem>>, vector<128x128xbf16>
    %cst = arith.constant dense<0.000000e+00> : vector<8x128xf32>
    %3 = tpu.matmul %1, %2, %cst {dimension_numbers = #tpu.dot_dimension_numbers<[1], [0], [0], [1], [0, 0, 1, 1], [], []>} : vector<8x128xbf16>, vector<128x128xbf16>, vector<8x128xf32> -> vector<8x128xf32>
    %c0_3 = arith.constant 0 : index
    %c0_4 = arith.constant 0 : index
    %4 = vector.load %arg10[%c0_3, %c0_4] : memref<1x128xf32, #tpu.memory_space<vmem>>, vector<1x128xf32>
    %5 = vector.broadcast %4 : vector<1x128xf32> to vector<8x128xf32>
    %6 = arith.addf %3, %5 : vector<8x128xf32>
    %cst_5 = arith.constant dense<0.000000e+00> : vector<128xf32>
    %7 = vector.multi_reduction <add>, %0, %cst_5 [0] : vector<8x128xf32> to vector<128xf32>
    %8 = vector.shape_cast %7 : vector<128xf32> to vector<1x128xf32>
    %cst_6 = arith.constant 1.250000e-01 : f32
    %9 = vector.broadcast %cst_6 : f32 to vector<1x128xf32>
    %10 = arith.mulf %8, %9 : vector<1x128xf32>
    %11 = vector.broadcast %10 : vector<1x128xf32> to vector<8x128xf32>
    %12 = arith.subf %0, %11 : vector<8x128xf32>
    %13 = arith.mulf %12, %12 : vector<8x128xf32>
    %cst_7 = arith.constant dense<0.000000e+00> : vector<128xf32>
    %14 = vector.multi_reduction <add>, %13, %cst_7 [0] : vector<8x128xf32> to vector<128xf32>
    %15 = vector.shape_cast %14 : vector<128xf32> to vector<1x128xf32>
    %cst_8 = arith.constant 1.250000e-01 : f32
    %16 = vector.broadcast %cst_8 : f32 to vector<1x128xf32>
    %17 = arith.mulf %15, %16 : vector<1x128xf32>
    %c0_9 = arith.constant 0 : index
    %c0_10 = arith.constant 0 : index
    %18 = vector.load %arg1[%c0_9, %c0_10] : memref<1x128xf32, #tpu.memory_space<vmem>>, vector<1x128xf32>
    %cst_11 = arith.constant 9.99999974E-6 : f32
    %19 = vector.broadcast %cst_11 : f32 to vector<1x128xf32>
    %20 = arith.addf %17, %19 : vector<1x128xf32>
    %21 = math.rsqrt %20 : vector<1x128xf32>
    %22 = arith.mulf %18, %21 : vector<1x128xf32>
    %23 = vector.broadcast %22 : vector<1x128xf32> to vector<8x128xf32>
    %24 = arith.mulf %12, %23 : vector<8x128xf32>
    %c0_12 = arith.constant 0 : index
    %c0_13 = arith.constant 0 : index
    %25 = vector.load %arg2[%c0_12, %c0_13] : memref<1x128xf32, #tpu.memory_space<vmem>>, vector<1x128xf32>
    %26 = vector.broadcast %25 : vector<1x128xf32> to vector<8x128xf32>
    %27 = arith.addf %24, %26 : vector<8x128xf32>
    %cst_14 = arith.constant 0.000000e+00 : f32
    %28 = vector.broadcast %cst_14 : f32 to vector<8x128xf32>
    %29 = arith.maximumf %27, %28 : vector<8x128xf32>
    %30 = arith.truncf %29 : vector<8x128xf32> to vector<8x128xbf16>
    %c0_15 = arith.constant 0 : index
    %c0_16 = arith.constant 0 : index
    %31 = vector.load %arg3[%c0_15, %c0_16] : memref<128x128xbf16, #tpu.memory_space<vmem>>, vector<128x128xbf16>
    %cst_17 = arith.constant dense<0.000000e+00> : vector<8x128xf32>
    %32 = tpu.matmul %30, %31, %cst_17 {dimension_numbers = #tpu.dot_dimension_numbers<[1], [0], [0], [1], [0, 0, 1, 1], [], []>} : vector<8x128xbf16>, vector<128x128xbf16>, vector<8x128xf32> -> vector<8x128xf32>
    %c0_18 = arith.constant 0 : index
    %c0_19 = arith.constant 0 : index
    %33 = vector.load %arg4[%c0_18, %c0_19] : memref<1x128xf32, #tpu.memory_space<vmem>>, vector<1x128xf32>
    %34 = vector.broadcast %33 : vector<1x128xf32> to vector<8x128xf32>
    %35 = arith.addf %32, %34 : vector<8x128xf32>
    %cst_20 = arith.constant dense<0.000000e+00> : vector<128xf32>
    %36 = vector.multi_reduction <add>, %35, %cst_20 [0] : vector<8x128xf32> to vector<128xf32>
    %37 = vector.shape_cast %36 : vector<128xf32> to vector<1x128xf32>
    %cst_21 = arith.constant 1.250000e-01 : f32
    %38 = vector.broadcast %cst_21 : f32 to vector<1x128xf32>
    %39 = arith.mulf %37, %38 : vector<1x128xf32>
    %40 = vector.broadcast %39 : vector<1x128xf32> to vector<8x128xf32>
    %41 = arith.subf %35, %40 : vector<8x128xf32>
    %42 = arith.mulf %41, %41 : vector<8x128xf32>
    %cst_22 = arith.constant dense<0.000000e+00> : vector<128xf32>
    %43 = vector.multi_reduction <add>, %42, %cst_22 [0] : vector<8x128xf32> to vector<128xf32>
    %44 = vector.shape_cast %43 : vector<128xf32> to vector<1x128xf32>
    %cst_23 = arith.constant 1.250000e-01 : f32
    %45 = vector.broadcast %cst_23 : f32 to vector<1x128xf32>
    %46 = arith.mulf %44, %45 : vector<1x128xf32>
    %c0_24 = arith.constant 0 : index
    %c0_25 = arith.constant 0 : index
    %47 = vector.load %arg5[%c0_24, %c0_25] : memref<1x128xf32, #tpu.memory_space<vmem>>, vector<1x128xf32>
    %cst_26 = arith.constant 9.99999974E-6 : f32
    %48 = vector.broadcast %cst_26 : f32 to vector<1x128xf32>
    %49 = arith.addf %46, %48 : vector<1x128xf32>
    %50 = math.rsqrt %49 : vector<1x128xf32>
    %51 = arith.mulf %47, %50 : vector<1x128xf32>
    %52 = vector.broadcast %51 : vector<1x128xf32> to vector<8x128xf32>
    %53 = arith.mulf %41, %52 : vector<8x128xf32>
    %c0_27 = arith.constant 0 : index
    %c0_28 = arith.constant 0 : index
    %54 = vector.load %arg6[%c0_27, %c0_28] : memref<1x128xf32, #tpu.memory_space<vmem>>, vector<1x128xf32>
    %55 = vector.broadcast %54 : vector<1x128xf32> to vector<8x128xf32>
    %56 = arith.addf %53, %55 : vector<8x128xf32>
    %cst_29 = arith.constant 0.000000e+00 : f32
    %57 = vector.broadcast %cst_29 : f32 to vector<8x128xf32>
    %58 = arith.maximumf %56, %57 : vector<8x128xf32>
    %59 = arith.truncf %58 : vector<8x128xf32> to vector<8x128xbf16>
    %c0_30 = arith.constant 0 : index
    %c0_31 = arith.constant 0 : index
    %60 = vector.load %arg7[%c0_30, %c0_31] : memref<128x128xbf16, #tpu.memory_space<vmem>>, vector<128x128xbf16>
    %cst_32 = arith.constant dense<0.000000e+00> : vector<8x128xf32>
    %61 = tpu.matmul %59, %60, %cst_32 {dimension_numbers = #tpu.dot_dimension_numbers<[1], [0], [0], [1], [0, 0, 1, 1], [], []>} : vector<8x128xbf16>, vector<128x128xbf16>, vector<8x128xf32> -> vector<8x128xf32>
    %c0_33 = arith.constant 0 : index
    %c0_34 = arith.constant 0 : index
    %62 = vector.load %arg8[%c0_33, %c0_34] : memref<1x128xf32, #tpu.memory_space<vmem>>, vector<1x128xf32>
    %63 = vector.broadcast %62 : vector<1x128xf32> to vector<8x128xf32>
    %64 = arith.addf %61, %63 : vector<8x128xf32>
    %65 = arith.addf %64, %6 : vector<8x128xf32>
    %cst_35 = arith.constant 0.000000e+00 : f32
    %66 = vector.broadcast %cst_35 : f32 to vector<8x128xf32>
    %67 = arith.maximumf %65, %66 : vector<8x128xf32>
    %c0_36 = arith.constant 0 : index
    %c0_37 = arith.constant 0 : index
    %68 = vector.load %arg11[%c0_36, %c0_37] : memref<8x128xf32, #tpu.memory_space<vmem>>, vector<8x128xf32>
    tpu.vector_store %arg11[%c0_36, %c0_37], %67 {strides = array<i32>} : memref<8x128xf32, #tpu.memory_space<vmem>>, vector<8x128xf32>,
    return
  }
}

</mosaic_0001>

<llo_original>
// kernel: residual_forward.1
$region0: #{residual_forward.1}
  #allocation0 [shape = 'u32[]', space=smem, size = 0x4, offset = 0x4, fixed_abs, tag = 'smem constant byte address 0x4 - core index']
  #allocation1 [shape = 'u32[144,128]{1,0:T(1,128)}', space=vmem, size = 0x12000, scoped, tag = 'internal scratch']
  %s0 = inlined_call_operand.vmem [shape: f32[8,128], index: 0, kind: input, shape index: {}]
  %s1 = inlined_call_operand.vmem [shape: f32[1,128], index: 1, kind: input, shape index: {}]
  %s2 = inlined_call_operand.vmem [shape: f32[1,128], index: 2, kind: input, shape index: {}]
  %s3 = inlined_call_operand.vmem [shape: bf16[128,128], index: 3, kind: input, shape index: {}]
  %s4 = inlined_call_operand.vmem [shape: f32[1,128], index: 4, kind: input, shape index: {}]
  %s5 = inlined_call_operand.vmem [shape: f32[1,128], index: 5, kind: input, shape index: {}]
  %s6 = inlined_call_operand.vmem [shape: f32[1,128], index: 6, kind: input, shape index: {}]
  %s7 = inlined_call_operand.vmem [shape: bf16[128,128], index: 7, kind: input, shape index: {}]
  %s8 = inlined_call_operand.vmem [shape: f32[1,128], index: 8, kind: input, shape index: {}]
  %s9 = inlined_call_operand.vmem [shape: bf16[128,128], index: 9, kind: input, shape index: {}]
  %s10 = inlined_call_operand.vmem [shape: f32[1,128], index: 10, kind: input, shape index: {}]
  %s11 = inlined_call_operand.hbm [shape: f32[8,128], index: 11, kind: output, shape index: {}]
  %s12 = sld [smem:[#allocation0]]
  $region54: #{residual_forward.1} parent=0
    _
  %s14 = ssub.s32 1, %s12
  %s15 = scalar_select 0, %s14, %s12
  $region1: #{residual_forward.1} parent=0
    #allocation2 [shape = 'u8[4096]{0}', space=vmem, size = 0x1000, scoped, tag = 'output window, operand 0, single buffered']
    #allocation3 [shape = 's32[1]{0}', space=sflag, size = 0x4, scoped, tag = 'scoped memory for residual_forward.1']
    %16 = vsyncpa [#allocation3], 0
    // Predicated region
    $region2: #{residual_forward.1} parent=1 // pred_check
      _
    $region3: #{residual_forward.1} parent=1 // pred_check_branch
      %18 = sbr.rel (0) target = $region5
    $region4: #{residual_forward.1} parent=1 // pred_region
      _
    $region5: #{residual_forward.1} parent=1 // pred_fallthru
      _
    // Predicated region
    $region6: #{residual_forward.1} parent=1 // pred_check
      _
    $region7: #{residual_forward.1} parent=1 // pred_check_branch
      %20 = sbr.rel (0) target = $region9
    $region8: #{residual_forward.1} parent=1 // pred_region
      _
    $region9: #{residual_forward.1} parent=1 // pred_fallthru
      _
    // Predicated region
    $region10: #{residual_forward.1} parent=1 // pred_check
      _
    $region11: #{residual_forward.1} parent=1 // pred_check_branch
      %22 = sbr.rel (0) target = $region13
    $region12: #{residual_forward.1} parent=1 // pred_region
      _
    $region13: #{residual_forward.1} parent=1 // pred_fallthru
      _
    // Predicated region
    $region14: #{residual_forward.1} parent=1 // pred_check
      _
    $region15: #{residual_forward.1} parent=1 // pred_check_branch
      %24 = sbr.rel (0) target = $region17
    $region16: #{residual_forward.1} parent=1 // pred_region
      _
    $region17: #{residual_forward.1} parent=1 // pred_fallthru
      _
    // Predicated region
    $region18: #{residual_forward.1} parent=1 // pred_check
      _
    $region19: #{residual_forward.1} parent=1 // pred_check_branch
      %26 = sbr.rel (0) target = $region21
    $region20: #{residual_forward.1} parent=1 // pred_region
      _
    $region21: #{residual_forward.1} parent=1 // pred_fallthru
      _
    // Predicated region
    $region22: #{residual_forward.1} parent=1 // pred_check
      _
    $region23: #{residual_forward.1} parent=1 // pred_check_branch
      %28 = sbr.rel (0) target = $region25
    $region24: #{residual_forward.1} parent=1 // pred_region
      _
    $region25: #{residual_forward.1} parent=1 // pred_fallthru
      _
    // Predicated region
    $region26: #{residual_forward.1} parent=1 // pred_check
      _
    $region27: #{residual_forward.1} parent=1 // pred_check_branch
      %30 = sbr.rel (0) target = $region29
    $region28: #{residual_forward.1} parent=1 // pred_region
      _
    $region29: #{residual_forward.1} parent=1 // pred_fallthru
      _
    // Predicated region
    $region30: #{residual_forward.1} parent=1 // pred_check
      _
    $region31: #{residual_forward.1} parent=1 // pred_check_branch
      %32 = sbr.rel (0) target = $region33
    $region32: #{residual_forward.1} parent=1 // pred_region
      _
    $region33: #{residual_forward.1} parent=1 // pred_fallthru
      _
    // Predicated region
    $region34: #{residual_forward.1} parent=1 // pred_check
      _
    $region35: #{residual_forward.1} parent=1 // pred_check_branch
      %34 = sbr.rel (0) target = $region37
    $region36: #{residual_forward.1} parent=1 // pred_region
      _
    $region37: #{residual_forward.1} parent=1 // pred_fallthru
      _
    // Predicated region
    $region38: #{residual_forward.1} parent=1 // pred_check
      _
    $region39: #{residual_forward.1} parent=1 // pred_check_branch
      %36 = sbr.rel (0) target = $region41
    $region40: #{residual_forward.1} parent=1 // pred_region
      _
    $region41: #{residual_forward.1} parent=1 // pred_fallthru
      _
    // Predicated region
    $region42: #{residual_forward.1} parent=1 // pred_check
      _
    $region43: #{residual_forward.1} parent=1 // pred_check_branch
      %38 = sbr.rel (0) target = $region45
    $region44: #{residual_forward.1} parent=1 // pred_region
      _
    $region45: #{residual_forward.1} parent=1 // pred_fallthru
      _
    %v40 = vld [vmem:[%s0] sm:$0xff]
    %v41 = vpack.c.bf16 %v40, %v40
    %v42 = vld [vmem:[%s9] sm:$0xf]
    %v43 = vld [vmem:[%s9 + $0x4] sm:$0xf]
    %v44 = vld [vmem:[%s9 + $0x8] sm:$0xf]
    %v45 = vld [vmem:[%s9 + $0xc] sm:$0xf]
    %v46 = vld [vmem:[%s9 + $0x10] sm:$0xf]
    %v47 = vld [vmem:[%s9 + $0x14] sm:$0xf]
    %v48 = vld [vmem:[%s9 + $0x18] sm:$0xf]
    %v49 = vld [vmem:[%s9 + $0x1c] sm:$0xf]
    %v50 = vld [vmem:[%s9 + $0x20] sm:$0xf]
    %v51 = vld [vmem:[%s9 + $0x24] sm:$0xf]
    %v52 = vld [vmem:[%s9 + $0x28] sm:$0xf]
    %v53 = vld [vmem:[%s9 + $0x2c] sm:$0xf]
    %v54 = vld [vmem:[%s9 + $0x30] sm:$0xf]
    %v55 = vld [vmem:[%s9 + $0x34] sm:$0xf]
    %v56 = vld [vmem:[%s9 + $0x38] sm:$0xf]
    %v57 = vld [vmem:[%s9 + $0x3c] sm:$0xf]
    %v58 = vld [vmem:[%s10] sm:$0x1]
    %v60 = vlaneseq
    %v61 = vshrl.u32 %v60, 7
    %v62 = vsub.s32 0, %v61
    %v63 = vrot.slane %v58, %v62
    %v81 = vunpack.c.l.b16 %v42
    %v82 = vunpack.c.l.b16 %v43
    %v83 = vunpack.c.l.b16 %v44
    %v84 = vunpack.c.l.b16 %v45
    %v85 = vunpack.c.l.b16 %v46
    %v86 = vunpack.c.l.b16 %v47
    %v87 = vunpack.c.l.b16 %v48
    %v88 = vunpack.c.l.b16 %v49
    %v89 = vunpack.c.l.b16 %v50
    %v90 = vunpack.c.l.b16 %v51
    %v91 = vunpack.c.l.b16 %v52
    %v92 = vunpack.c.l.b16 %v53
    %v93 = vunpack.c.l.b16 %v54
    %v94 = vunpack.c.l.b16 %v55
    %v95 = vunpack.c.l.b16 %v56
    %v96 = vunpack.c.l.b16 %v57
    %v97 = vpack.c.b16 %v82, %v81
    %v98 = vpack.c.b16 %v84, %v83
    %v99 = vpack.c.b16 %v86, %v85
    %v100 = vpack.c.b16 %v88, %v87
    %v101 = vpack.c.b16 %v90, %v89
    %v102 = vpack.c.b16 %v92, %v91
    %v103 = vpack.c.b16 %v94, %v93
    %v104 = vpack.c.b16 %v96, %v95
    %113 = vmatprep.subr.bf16.mxu0 0
    %114 = vmatpush1.bf16.msra.mxu0 %v104
    %115 = vmatprep.subr.bf16.mxu0 0
    %116 = vmatpush1.bf16.msra.mxu0 %v103
    %117 = vmatprep.subr.bf16.mxu0 0
    %118 = vmatpush1.bf16.msra.mxu0 %v102
    %119 = vmatprep.subr.bf16.mxu0 0
    %120 = vmatpush1.bf16.msra.mxu0 %v101
    %121 = vmatprep.subr.bf16.mxu0 0
    %122 = vmatpush1.bf16.msra.mxu0 %v100
    %123 = vmatprep.subr.bf16.mxu0 0
    %124 = vmatpush1.bf16.msra.mxu0 %v99
    %125 = vmatprep.subr.bf16.mxu0 0
    %126 = vmatpush1.bf16.msra.mxu0 %v98
    %127 = vmatprep.subr.bf16.mxu0 0
    %128 = vmatpush1.bf16.msra.mxu0 %v97
    %129 = vmatprep.subr.bf16.mxu0 0
    %130 = vmatpush2.bf16.msra.mxu0 0
    %131 = vmatprep.subr.bf16.mxu0 0
    %132 = vmatpush2.bf16.msra.mxu0 0
    %133 = vmatprep.subr.bf16.mxu0 0
    %134 = vmatpush2.bf16.msra.mxu0 0
    %135 = vmatprep.subr.bf16.mxu0 0
    %136 = vmatpush2.bf16.msra.mxu0 0
    %137 = vmatprep.subr.bf16.mxu0 0
    %138 = vmatpush2.bf16.msra.mxu0 0
    %139 = vmatprep.subr.bf16.mxu0 0
    %140 = vmatpush2.bf16.msra.mxu0 0
    %141 = vmatprep.subr.bf16.mxu0 0
    %142 = vmatpush2.bf16.msra.mxu0 0
    %143 = vmatprep.subr.bf16.mxu0 0
    %144 = vmatpush2.bf16.msra.mxu0 0
    %145 = vmatprep.mubr.bf16.mxu0 0
    %146 = vmatmul.mubr.bf16.gmra.mxu0 %v41
    %v147 = vpop.f32.mrf.mxu0
    %v148 = vadd.f32 %v63, %v147
    %v149 = vpop.f32.mrf.mxu0
    %v150 = vpop.f32.mrf.mxu0
    %v151 = vpop.f32.mrf.mxu0
    %152 = vdwg.mxu0
    %v153 = vrot.slane %v40, 4
    %v154 = vadd.f32 %v40, %v153
    %v155 = vrot.slane %v154, 2
    %v156 = vadd.f32 %v154, %v155
    %v157 = vrot.slane %v156, 1
    %v158 = vadd.f32 %v156, %v157
    %v159 = vmul.f32 %v158, 0.125
    %v160 = vsub.f32 %v40, %v159
    %v161 = vmul.f32 %v160, %v160
    %v162 = vrot.slane %v161, 4
    %v163 = vadd.f32 %v161, %v162
    %v164 = vrot.slane %v163, 2
    %v165 = vadd.f32 %v163, %v164
    %v166 = vrot.slane %v165, 1
    %v167 = vadd.f32 %v165, %v166
    %v168 = vmul.f32 %v167, 0.125
    %v169 = vld [vmem:[%s1] sm:$0x1]
    %v170 = vadd.f32 %v168, 1e-05
    %v171 = vrsqrt.pop %v170
    %v172 = vmul.f32 %v169, %v171
    %v174 = vlaneseq
    %v175 = vshrl.u32 %v174, 7
    %v176 = vsub.s32 0, %v175
    %v177 = vrot.slane %v172, %v176
    %v179 = vmul.f32 %v160, %v177
    %v180 = vld [vmem:[%s2] sm:$0x1]
    %v182 = vlaneseq
    %v183 = vshrl.u32 %v182, 7
    %v184 = vsub.s32 0, %v183
    %v185 = vrot.slane %v180, %v184
    %v187 = vadd.f32 %v179, %v185
    %v188 = vmax.f32 %v187, 0.0
    %v189 = vpack.c.bf16 %v188, %v188
    %v190 = vld [vmem:[%s3] sm:$0xf]
    %v191 = vld [vmem:[%s3 + $0x4] sm:$0xf]
    %v192 = vld [vmem:[%s3 + $0x8] sm:$0xf]
    %v193 = vld [vmem:[%s3 + $0xc] sm:$0xf]
    %v194 = vld [vmem:[%s3 + $0x10] sm:$0xf]
    %v195 = vld [vmem:[%s3 + $0x14] sm:$0xf]
    %v196 = vld [vmem:[%s3 + $0x18] sm:$0xf]
    %v197 = vld [vmem:[%s3 + $0x1c] sm:$0xf]
    %v198 = vld [vmem:[%s3 + $0x20] sm:$0xf]
    %v199 = vld [vmem:[%s3 + $0x24] sm:$0xf]
    %v200 = vld [vmem:[%s3 + $0x28] sm:$0xf]
    %v201 = vld [vmem:[%s3 + $0x2c] sm:$0xf]
    %v202 = vld [vmem:[%s3 + $0x30] sm:$0xf]
    %v203 = vld [vmem:[%s3 + $0x34] sm:$0xf]
    %v204 = vld [vmem:[%s3 + $0x38] sm:$0xf]
    %v205 = vld [vmem:[%s3 + $0x3c] sm:$0xf]
    %v206 = vld [vmem:[%s4] sm:$0x1]
    %v208 = vlaneseq
    %v209 = vshrl.u32 %v208, 7
    %v210 = vsub.s32 0, %v209
    %v211 = vrot.slane %v206, %v210
    %v229 = vunpack.c.l.b16 %v190
    %v230 = vunpack.c.l.b16 %v191
    %v231 = vunpack.c.l.b16 %v192
    %v232 = vunpack.c.l.b16 %v193
    %v233 = vunpack.c.l.b16 %v194
    %v234 = vunpack.c.l.b16 %v195
    %v235 = vunpack.c.l.b16 %v196
    %v236 = vunpack.c.l.b16 %v197
    %v237 = vunpack.c.l.b16 %v198
    %v238 = vunpack.c.l.b16 %v199
    %v239 = vunpack.c.l.b16 %v200
    %v240 = vunpack.c.l.b16 %v201
    %v241 = vunpack.c.l.b16 %v202
    %v242 = vunpack.c.l.b16 %v203
    %v243 = vunpack.c.l.b16 %v204
    %v244 = vunpack.c.l.b16 %v205
    %v245 = vpack.c.b16 %v230, %v229
    %v246 = vpack.c.b16 %v232, %v231
    %v247 = vpack.c.b16 %v234, %v233
    %v248 = vpack.c.b16 %v236, %v235
    %v249 = vpack.c.b16 %v238, %v237
    %v250 = vpack.c.b16 %v240, %v239
    %v251 = vpack.c.b16 %v242, %v241
    %v252 = vpack.c.b16 %v244, %v243
    %261 = vmatprep.subr.bf16.mxu0 0
    %262 = vmatpush1.bf16.msra.mxu0 %v252
    %263 = vmatprep.subr.bf16.mxu0 0
    %264 = vmatpush1.bf16.msra.mxu0 %v251
    %265 = vmatprep.subr.bf16.mxu0 0
    %266 = vmatpush1.bf16.msra.mxu0 %v250
    %267 = vmatprep.subr.bf16.mxu0 0
    %268 = vmatpush1.bf16.msra.mxu0 %v249
    %269 = vmatprep.subr.bf16.mxu0 0
    %270 = vmatpush1.bf16.msra.mxu0 %v248
    %271 = vmatprep.subr.bf16.mxu0 0
    %272 = vmatpush1.bf16.msra.mxu0 %v247
    %273 = vmatprep.subr.bf16.mxu0 0
    %274 = vmatpush1.bf16.msra.mxu0 %v246
    %275 = vmatprep.subr.bf16.mxu0 0
    %276 = vmatpush1.bf16.msra.mxu0 %v245
    %277 = vmatprep.subr.bf16.mxu0 0
    %278 = vmatpush2.bf16.msra.mxu0 0
    %279 = vmatprep.subr.bf16.mxu0 0
    %280 = vmatpush2.bf16.msra.mxu0 0
    %281 = vmatprep.subr.bf16.mxu0 0
    %282 = vmatpush2.bf16.msra.mxu0 0
    %283 = vmatprep.subr.bf16.mxu0 0
    %284 = vmatpush2.bf16.msra.mxu0 0
    %285 = vmatprep.subr.bf16.mxu0 0
    %286 = vmatpush2.bf16.msra.mxu0 0
    %287 = vmatprep.subr.bf16.mxu0 0
    %288 = vmatpush2.bf16.msra.mxu0 0
    %289 = vmatprep.subr.bf16.mxu0 0
    %290 = vmatpush2.bf16.msra.mxu0 0
    %291 = vmatprep.subr.bf16.mxu0 0
    %292 = vmatpush2.bf16.msra.mxu0 0
    %293 = vmatprep.mubr.bf16.mxu0 0
    %294 = vmatmul.mubr.bf16.gmra.mxu0 %v189
    %v295 = vpop.f32.mrf.mxu0
    %v296 = vadd.f32 %v211, %v295
    %v297 = vpop.f32.mrf.mxu0
    %v298 = vpop.f32.mrf.mxu0
    %v299 = vpop.f32.mrf.mxu0
    %300 = vdwg.mxu0
    %v301 = vrot.slane %v296, 4
    %v302 = vadd.f32 %v296, %v301
    %v303 = vrot.slane %v302, 2
    %v304 = vadd.f32 %v302, %v303
    %v305 = vrot.slane %v304, 1
    %v306 = vadd.f32 %v304, %v305
    %v307 = vmul.f32 %v306, 0.125
    %v308 = vsub.f32 %v296, %v307
    %v309 = vmul.f32 %v308, %v308
    %v310 = vrot.slane %v309, 4
    %v311 = vadd.f32 %v309, %v310
    %v312 = vrot.slane %v311, 2
    %v313 = vadd.f32 %v311, %v312
    %v314 = vrot.slane %v313, 1
    %v315 = vadd.f32 %v313, %v314
    %v316 = vmul.f32 %v315, 0.125
    %v317 = vld [vmem:[%s5] sm:$0x1]
    %v318 = vadd.f32 %v316, 1e-05
    %v319 = vrsqrt.pop %v318
    %v320 = vmul.f32 %v317, %v319
    %v322 = vlaneseq
    %v323 = vshrl.u32 %v322, 7
    %v324 = vsub.s32 0, %v323
    %v325 = vrot.slane %v320, %v324
    %v327 = vmul.f32 %v308, %v325
    %v328 = vld [vmem:[%s6] sm:$0x1]
    %v330 = vlaneseq
    %v331 = vshrl.u32 %v330, 7
    %v332 = vsub.s32 0, %v331
    %v333 = vrot.slane %v328, %v332
    %v335 = vadd.f32 %v327, %v333
    %v336 = vmax.f32 %v335, 0.0
    %v337 = vpack.c.bf16 %v336, %v336
    %v338 = vld [vmem:[%s7] sm:$0xf]
    %v339 = vld [vmem:[%s7 + $0x4] sm:$0xf]
    %v340 = vld [vmem:[%s7 + $0x8] sm:$0xf]
    %v341 = vld [vmem:[%s7 + $0xc] sm:$0xf]
    %v342 = vld [vmem:[%s7 + $0x10] sm:$0xf]
    %v343 = vld [vmem:[%s7 + $0x14] sm:$0xf]
    %v344 = vld [vmem:[%s7 + $0x18] sm:$0xf]
    %v345 = vld [vmem:[%s7 + $0x1c] sm:$0xf]
    %v346 = vld [vmem:[%s7 + $0x20] sm:$0xf]
    %v347 = vld [vmem:[%s7 + $0x24] sm:$0xf]
    %v348 = vld [vmem:[%s7 + $0x28] sm:$0xf]
    %v349 = vld [vmem:[%s7 + $0x2c] sm:$0xf]
    %v350 = vld [vmem:[%s7 + $0x30] sm:$0xf]
    %v351 = vld [vmem:[%s7 + $0x34] sm:$0xf]
    %v352 = vld [vmem:[%s7 + $0x38] sm:$0xf]
    %v353 = vld [vmem:[%s7 + $0x3c] sm:$0xf]
    %v354 = vld [vmem:[%s8] sm:$0x1]
    %v356 = vlaneseq
    %v357 = vshrl.u32 %v356, 7
    %v358 = vsub.s32 0, %v357
    %v359 = vrot.slane %v354, %v358
    %v377 = vunpack.c.l.b16 %v338
    %v378 = vunpack.c.l.b16 %v339
    %v379 = vunpack.c.l.b16 %v340
    %v380 = vunpack.c.l.b16 %v341
    %v381 = vunpack.c.l.b16 %v342
    %v382 = vunpack.c.l.b16 %v343
    %v383 = vunpack.c.l.b16 %v344
    %v384 = vunpack.c.l.b16 %v345
    %v385 = vunpack.c.l.b16 %v346
    %v386 = vunpack.c.l.b16 %v347
    %v387 = vunpack.c.l.b16 %v348
    %v388 = vunpack.c.l.b16 %v349
    %v389 = vunpack.c.l.b16 %v350
    %v390 = vunpack.c.l.b16 %v351
    %v391 = vunpack.c.l.b16 %v352
    %v392 = vunpack.c.l.b16 %v353
    %v393 = vpack.c.b16 %v378, %v377
    %v394 = vpack.c.b16 %v380, %v379
    %v395 = vpack.c.b16 %v382, %v381
    %v396 = vpack.c.b16 %v384, %v383
    %v397 = vpack.c.b16 %v386, %v385
    %v398 = vpack.c.b16 %v388, %v387
    %v399 = vpack.c.b16 %v390, %v389
    %v400 = vpack.c.b16 %v392, %v391
    %409 = vmatprep.subr.bf16.mxu0 0
    %410 = vmatpush1.bf16.msra.mxu0 %v400
    %411 = vmatprep.subr.bf16.mxu0 0
    %412 = vmatpush1.bf16.msra.mxu0 %v399
    %413 = vmatprep.subr.bf16.mxu0 0
    %414 = vmatpush1.bf16.msra.mxu0 %v398
    %415 = vmatprep.subr.bf16.mxu0 0
    %416 = vmatpush1.bf16.msra.mxu0 %v397
    %417 = vmatprep.subr.bf16.mxu0 0
    %418 = vmatpush1.bf16.msra.mxu0 %v396
    %419 = vmatprep.subr.bf16.mxu0 0
    %420 = vmatpush1.bf16.msra.mxu0 %v395
    %421 = vmatprep.subr.bf16.mxu0 0
    %422 = vmatpush1.bf16.msra.mxu0 %v394
    %423 = vmatprep.subr.bf16.mxu0 0
    %424 = vmatpush1.bf16.msra.mxu0 %v393
    %425 = vmatprep.subr.bf16.mxu0 0
    %426 = vmatpush2.bf16.msra.mxu0 0
    %427 = vmatprep.subr.bf16.mxu0 0
    %428 = vmatpush2.bf16.msra.mxu0 0
    %429 = vmatprep.subr.bf16.mxu0 0
    %430 = vmatpush2.bf16.msra.mxu0 0
    %431 = vmatprep.subr.bf16.mxu0 0
    %432 = vmatpush2.bf16.msra.mxu0 0
    %433 = vmatprep.subr.bf16.mxu0 0
    %434 = vmatpush2.bf16.msra.mxu0 0
    %435 = vmatprep.subr.bf16.mxu0 0
    %436 = vmatpush2.bf16.msra.mxu0 0
    %437 = vmatprep.subr.bf16.mxu0 0
    %438 = vmatpush2.bf16.msra.mxu0 0
    %439 = vmatprep.subr.bf16.mxu0 0
    %440 = vmatpush2.bf16.msra.mxu0 0
    %441 = vmatprep.mubr.bf16.mxu0 0
    %442 = vmatmul.mubr.bf16.gmra.mxu0 %v337
    %v443 = vpop.f32.mrf.mxu0
    %v444 = vadd.f32 %v359, %v443
    %v445 = vpop.f32.mrf.mxu0
    %v446 = vpop.f32.mrf.mxu0
    %v447 = vpop.f32.mrf.mxu0
    %448 = vdwg.mxu0
    %v449 = vadd.f32 %v444, %v148
    %v450 = vmax.f32 %v449, 0.0
    %451 = vst [vmem:[#allocation2] sm:$0xff] %v450
    // Predicated region
    $region46: #{residual_forward.1} parent=1 // pred_check
      _
    $region47: #{residual_forward.1} parent=1 // pred_check_branch
      %453 = sbr.rel (0) target = $region49
    $region48: #{residual_forward.1} parent=1 // pred_region
      %s455 = ssub.s32 128, 128
      %456 = vsyncadd [#allocation3], %s455
      %s458 = sshll.u32 [#allocation2], 4
      %s459 = int_to_ptr.vmem [resolvable:$true] %s458
      %461 = dma.vmem_to_hbm [thread:$0]  %s459, 128, %s11, [#allocation3]
    $region49: #{residual_forward.1} parent=1 // pred_fallthru
      _
    // Predicated region
    $region50: #{residual_forward.1} parent=1 // pred_check
      _
    $region51: #{residual_forward.1} parent=1 // pred_check_branch
      %463 = sbr.rel (0) target = $region53
    $region52: #{residual_forward.1} parent=1 // pred_region
      %464 = dma.done [#allocation3], 128
    $region53: #{residual_forward.1} parent=1 // pred_fallthru
      _
    %465 = vsyncpa [#allocation3], 1

</llo_original>
